<compile_context>
chip_gen: v7x
topology: tpu7x:2x2x1
jax: 0.10.0
libtpu: 0.0.40
codegen_flags: <defaults>
</compile_context>

<pallas_src>
import math
import functools

import jax
import jax.numpy as jnp
from jax import lax
from jax.experimental import pallas as pl
from jax.experimental.pallas import tpu as pltpu


def _attn_kernel(x_ref, wqkv_ref, bqkv_ref, wp_ref, bp_ref, o_ref,
                 mask_ref, acc_ref, *, n_head, hd):
    h = pl.program_id(1)

    @pl.when(h == 0)
    def _init():
        # Build the additive causal mask once per batch row and zero the
        # output-projection accumulator.
        T = mask_ref.shape[0]
        row = lax.broadcasted_iota(jnp.int32, (T, T), 0)
        col = lax.broadcasted_iota(jnp.int32, (T, T), 1)
        mask_ref[...] = jnp.where(col <= row, 0.0, -jnp.inf).astype(jnp.float32)
        acc_ref[...] = jnp.zeros_like(acc_ref)

    x = x_ref[0]                               # (T, C), native dtype (f32 / bf16)
    dt = x_ref.dtype
    scale = 1.0 / math.sqrt(hd)

    # Fused per-head QKV projection: one (T, C) x (C, 3*hd) MXU pass + one bias add.
    qkv = (jnp.dot(x, wqkv_ref[0], preferred_element_type=jnp.float32)
           + bqkv_ref[0])                      # (T, 3*hd) f32
    q = qkv[:, :hd] * scale                    # fold 1/sqrt(hd) into q once
    k = qkv[:, hd:2 * hd]
    v = qkv[:, 2 * hd:3 * hd]

    # Scores: contract last dims directly (no explicit k transpose).
    att = lax.dot_general(q.astype(dt), k.astype(dt),
                          dimension_numbers=(((1,), (1,)), ((), ())),
                          preferred_element_type=jnp.float32)      # (T, T)
    att = att + mask_ref[...]                  # additive causal mask (0 / -inf)

    # Numerically-stable softmax; normalization via EUP approximate reciprocal.
    att = att - jnp.max(att, axis=-1, keepdims=True)
    p = jnp.exp(att)
    p = p * pl.reciprocal(jnp.sum(p, axis=-1, keepdims=True), approx=True)
    # TODO(synk): attn dropout skipped (identity / eval mode).

    y_h = jnp.dot(p.astype(dt), v.astype(dt),
                  preferred_element_type=jnp.float32)              # (T, hd)

    # Fold this head straight into the output projection (reduction over heads).
    acc_ref[...] += jnp.dot(y_h.astype(dt), wp_ref[0],
                            preferred_element_type=jnp.float32)    # (T, C)

    @pl.when(h == n_head - 1)
    def _finalize():
        # TODO(synk): resid dropout skipped (identity / eval mode).
        o_ref[0] = (acc_ref[...] + bp_ref[...]).astype(o_ref.dtype)


def causal_self_attention(x, params, n_head):
    """x: (B, T, C).  params: dict of (C, C) weights and (1, C) biases."""
    B, T, C = x.shape
    assert C % n_head == 0
    hd = C // n_head

    # One-time parameter re-layout (in a real model this is done at init):
    #   wqkv: (n_head, C, 3*hd)  per-head fused [Wq_h | Wk_h | Wv_h] columns
    #   bqkv: (n_head, 1, 3*hd)
    #   wp  : (n_head, hd, C)    per-head rows of the output projection
    def cols_per_head(w):                      # (C, C) -> (n_head, C, hd)
        return w.reshape(C, n_head, hd).transpose(1, 0, 2)

    wqkv = jnp.concatenate([cols_per_head(params["wq"]),
                            cols_per_head(params["wk"]),
                            cols_per_head(params["wv"])], axis=-1)
    bqkv = jnp.concatenate([params["bq"].reshape(n_head, 1, hd),
                            params["bk"].reshape(n_head, 1, hd),
                            params["bv"].reshape(n_head, 1, hd)], axis=-1)
    wp = params["wp"].reshape(n_head, hd, C)
    bp = params["bp"]

    kernel = functools.partial(_attn_kernel, n_head=n_head, hd=hd)

    itemsize = jnp.dtype(x.dtype).itemsize
    cost = pl.CostEstimate(
        flops=int(2 * B * T * C * 3 * C             # fused QKV projection
                  + 4 * B * n_head * T * T * hd     # scores + att @ v
                  + 2 * B * T * C * C),             # output projection
        transcendentals=int(B * n_head * T * T),    # exp
        bytes_accessed=int(2 * B * T * C * itemsize
                           + B * (4 * C * C + 4 * C) * itemsize),
    )

    return pl.pallas_call(
        kernel,
        out_shape=jax.ShapeDtypeStruct((B, T, C), x.dtype),
        grid_spec=pltpu.PrefetchScalarGridSpec(
            num_scalar_prefetch=0,
            grid=(B, n_head),                       # reduction (head) axis last
            in_specs=[
                pl.BlockSpec((1, T, C), lambda b, h: (b, 0, 0)),       # x
                pl.BlockSpec((1, C, 3 * hd), lambda b, h: (h, 0, 0)),  # fused QKV W
                pl.BlockSpec((1, 1, 3 * hd), lambda b, h: (h, 0, 0)),  # fused QKV b
                pl.BlockSpec((1, hd, C), lambda b, h: (h, 0, 0)),      # out-proj rows
                pl.BlockSpec((1, C), lambda b, h: (0, 0)),             # out-proj bias
            ],
            out_specs=pl.BlockSpec((1, T, C), lambda b, h: (b, 0, 0)),
            scratch_shapes=[
                pltpu.VMEM((T, T), jnp.float32),    # additive causal mask
                pltpu.VMEM((T, C), jnp.float32),    # out-proj accumulator over heads
            ],
        ),
        compiler_params=pltpu.CompilerParams(
            dimension_semantics=("parallel", "arbitrary"),
            vmem_limit_bytes=48 * 1024 * 1024,      # headroom under 64 MiB (v7x)
        ),
        cost_estimate=cost,
    )(x, wqkv, bqkv, wp, bp)


def _reference(x, params, n_head):
    """Pure-JAX reference mirroring the PyTorch forward (eval mode)."""
    B, T, C = x.shape
    hd = C // n_head

    def lin(x, w, b):
        return x @ w + b[0]

    q = lin(x, params["wq"], params["bq"]).reshape(B, T, n_head, hd).transpose(0, 2, 1, 3)
    k = lin(x, params["wk"], params["bk"]).reshape(B, T, n_head, hd).transpose(0, 2, 1, 3)
    v = lin(x, params["wv"], params["bv"]).reshape(B, T, n_head, hd).transpose(0, 2, 1, 3)

    att = (q @ jnp.swapaxes(k, -2, -1)) * (1.0 / math.sqrt(hd))
    mask = jnp.tril(jnp.ones((T, T), dtype=bool))
    att = jnp.where(mask[None, None], att, -jnp.inf)
    att = jax.nn.softmax(att, axis=-1)
    y = att @ v
    y = y.transpose(0, 2, 1, 3).reshape(B, T, C)
    return lin(y, params["wp"], params["bp"])


if __name__ == "__main__":
    # Small config consistent with the module: n_embd divisible by n_head.
    B, T, C, N_HEAD = 2, 8, 32, 4

    key = jax.random.PRNGKey(0)
    ks = jax.random.split(key, 9)
    bound = 1.0 / math.sqrt(C)   # nn.Linear-style init range (deterministic)

    params = {
        "wq": jax.random.uniform(ks[0], (C, C), jnp.float32, -bound, bound),
        "bq": jax.random.uniform(ks[1], (1, C), jnp.float32, -bound, bound),
        "wk": jax.random.uniform(ks[2], (C, C), jnp.float32, -bound, bound),
        "bk": jax.random.uniform(ks[3], (1, C), jnp.float32, -bound, bound),
        "wv": jax.random.uniform(ks[4], (C, C), jnp.float32, -bound, bound),
        "bv": jax.random.uniform(ks[5], (1, C), jnp.float32, -bound, bound),
        "wp": jax.random.uniform(ks[6], (C, C), jnp.float32, -bound, bound),
        "bp": jax.random.uniform(ks[7], (1, C), jnp.float32, -bound, bound),
    }
    x = jax.random.normal(ks[8], (B, T, C), jnp.float32)

    out = causal_self_attention(x, params, N_HEAD)
    out = jax.block_until_ready(out)

    ref = _reference(x, params, N_HEAD)
    assert out.shape == (B, T, C)
    # Tolerance slack is solely for the EUP approximate reciprocal used in the
    # softmax normalization (everything else is exact f32).
    assert jnp.allclose(out, ref, atol=2e-2, rtol=2e-2), "mismatch vs reference"

    print("KERNEL_OK")
</pallas_src>

<mosaic_0001>
module attributes {stable_mosaic.version = 11 : i64} {
  func.func @_attn_kernel(%arg0: i32, %arg1: i32, %arg2: memref<1x8x32xf32, #tpu.memory_space<vmem>>, %arg3: memref<1x32x24xf32, #tpu.memory_space<vmem>>, %arg4: memref<1x1x24xf32, #tpu.memory_space<vmem>>, %arg5: memref<1x8x32xf32, #tpu.memory_space<vmem>>, %arg6: memref<1x32xf32, #tpu.memory_space<vmem>>, %arg7: memref<1x8x32xf32, #tpu.memory_space<vmem>>, %arg8: memref<8x8xf32, #tpu.memory_space<vmem>>, %arg9: memref<8x32xf32, #tpu.memory_space<vmem>>) attributes {dimension_semantics = [#tpu.dimension_semantics<parallel>, #tpu.dimension_semantics<arbitrary>], iteration_bounds = array<i64: 2, 4>, scalar_prefetch = 0 : i64, scratch_operands = 2 : i64, tpu.core_type = #tpu.core_type<tc>, window_params = [{transform_indices = @transform_0, window_bounds = array<i64: 1, 8, 32>}, {transform_indices = @transform_1, window_bounds = array<i64: 1, 32, 24>}, {transform_indices = @transform_2, window_bounds = array<i64: 1, 1, 24>}, {transform_indices = @transform_3, window_bounds = array<i64: 1, 8, 32>}, {pipeline_mode = #tpu.pipeline_mode<synchronous>, transform_indices = @transform_4, window_bounds = array<i64: 1, 32>}, {transform_indices = @transform_5, window_bounds = array<i64: 1, 8, 32>}]} {
    %c0_i32 = arith.constant 0 : i32
    %0 = arith.cmpi eq, %arg1, %c0_i32 : i32
    %1 = arith.extui %0 : i1 to i32
    %c0_i32_0 = arith.constant 0 : i32
    %2 = arith.cmpi ne, %1, %c0_i32_0 : i32
    scf.if %2 {
      %40 = tpu.iota {dimensions = array<i32: 0>} : vector<8x8xi32>
      %41 = tpu.iota {dimensions = array<i32: 1>} : vector<8x8xi32>
      %42 = arith.cmpi sle, %41, %40 : vector<8x8xi32>
      %cst_25 = arith.constant 0.000000e+00 : f32
      %cst_26 = arith.constant 0xFF800000 : f32
      %43 = vector.broadcast %cst_25 : f32 to vector<8x8xf32>
      %44 = vector.broadcast %cst_26 : f32 to vector<8x8xf32>
      %45 = arith.select %42, %43, %44 : vector<8x8xi1>, vector<8x8xf32>
      %c0_27 = arith.constant 0 : index
      %c0_28 = arith.constant 0 : index
      %46 = vector.load %arg8[%c0_27, %c0_28] : memref<8x8xf32, #tpu.memory_space<vmem>>, vector<8x8xf32>
      tpu.vector_store %arg8[%c0_27, %c0_28], %45 {strides = array<i32>} : memref<8x8xf32, #tpu.memory_space<vmem>>, vector<8x8xf32>,
      %cst_29 = arith.constant 0.000000e+00 : f32
      %47 = vector.broadcast %cst_29 : f32 to vector<8x32xf32>
      %c0_30 = arith.constant 0 : index
      %c0_31 = arith.constant 0 : index
      %48 = vector.load %arg9[%c0_30, %c0_31] : memref<8x32xf32, #tpu.memory_space<vmem>>, vector<8x32xf32>
      tpu.vector_store %arg9[%c0_30, %c0_31], %47 {strides = array<i32>} : memref<8x32xf32, #tpu.memory_space<vmem>>, vector<8x32xf32>,
    } else {
    }
    %c0 = arith.constant 0 : index
    %c0_1 = arith.constant 0 : index
    %c0_2 = arith.constant 0 : index
    %3 = vector.load %arg2[%c0, %c0_1, %c0_2] : memref<1x8x32xf32, #tpu.memory_space<vmem>>, vector<1x8x32xf32>
    %4 = vector.shape_cast %3 : vector<1x8x32xf32> to vector<8x32xf32>
    %c0_3 = arith.constant 0 : index
    %c0_4 = arith.constant 0 : index
    %c0_5 = arith.constant 0 : index
    %5 = vector.load %arg3[%c0_3, %c0_4, %c0_5] : memref<1x32x24xf32, #tpu.memory_space<vmem>>, vector<1x32x24xf32>
    %6 = vector.shape_cast %5 : vector<1x32x24xf32> to vector<32x24xf32>
    %cst = arith.constant dense<0.000000e+00> : vector<8x24xf32>
    %7 = tpu.matmul %4, %6, %cst {dimension_numbers = #tpu.dot_dimension_numbers<[1], [0], [0], [1], [0, 0, 1, 1], [], []>} : vector<8x32xf32>, vector<32x24xf32>, vector<8x24xf32> -> vector<8x24xf32>
    %c0_6 = arith.constant 0 : index
    %c0_7 = arith.constant 0 : index
    %c0_8 = arith.constant 0 : index
    %8 = vector.load %arg4[%c0_6, %c0_7, %c0_8] : memref<1x1x24xf32, #tpu.memory_space<vmem>>, vector<1x1x24xf32>
    %9 = vector.shape_cast %8 : vector<1x1x24xf32> to vector<1x24xf32>
    %10 = vector.broadcast %9 : vector<1x24xf32> to vector<8x24xf32>
    %11 = arith.addf %7, %10 : vector<8x24xf32>
    %12 = vector.extract_strided_slice %11 {offsets = [0, 0], sizes = [8, 8], strides = [1, 1]} : vector<8x24xf32> to vector<8x8xf32>
    %cst_9 = arith.constant 0.353553385 : f32
    %13 = vector.broadcast %cst_9 : f32 to vector<8x8xf32>
    %14 = arith.mulf %12, %13 : vector<8x8xf32>
    %15 = vector.extract_strided_slice %11 {offsets = [0, 8], sizes = [8, 8], strides = [1, 1]} : vector<8x24xf32> to vector<8x8xf32>
    %16 = vector.extract_strided_slice %11 {offsets = [0, 16], sizes = [8, 8], strides = [1, 1]} : vector<8x24xf32> to vector<8x8xf32>
    %cst_10 = arith.constant dense<0.000000e+00> : vector<8x8xf32>
    %17 = tpu.matmul %14, %15, %cst_10 {dimension_numbers = #tpu.dot_dimension_numbers<[1], [1], [0], [0], [0, 0, 1, 0], [], []>} : vector<8x8xf32>, vector<8x8xf32>, vector<8x8xf32> -> vector<8x8xf32>
    %c0_11 = arith.constant 0 : index
    %c0_12 = arith.constant 0 : index
    %18 = vector.load %arg8[%c0_11, %c0_12] : memref<8x8xf32, #tpu.memory_space<vmem>>, vector<8x8xf32>
    %19 = arith.addf %17, %18 : vector<8x8xf32>
    %cst_13 = arith.constant dense<0xFF800000> : vector<8xf32>
    %20 = vector.multi_reduction <maximumf>, %19, %cst_13 [1] : vector<8x8xf32> to vector<8xf32>
    %21 = vector.shape_cast %20 : vector<8xf32> to vector<8x1xf32>
    %22 = vector.broadcast %21 : vector<8x1xf32> to vector<8x8xf32>
    %23 = arith.subf %19, %22 : vector<8x8xf32>
    %24 = math.exp %23 : vector<8x8xf32>
    %cst_14 = arith.constant dense<0.000000e+00> : vector<8xf32>
    %25 = vector.multi_reduction <add>, %24, %cst_14 [1] : vector<8x8xf32> to vector<8xf32>
    %26 = vector.shape_cast %25 : vector<8xf32> to vector<8x1xf32>
    %27 = tpu.reciprocal %26 {approx = true} : vector<8x1xf32> -> vector<8x1xf32>
    %28 = vector.broadcast %27 : vector<8x1xf32> to vector<8x8xf32>
    %29 = arith.mulf %24, %28 : vector<8x8xf32>
    %cst_15 = arith.constant dense<0.000000e+00> : vector<8x8xf32>
    %30 = tpu.matmul %29, %16, %cst_15 {dimension_numbers = #tpu.dot_dimension_numbers<[1], [0], [0], [1], [0, 0, 1, 1], [], []>} : vector<8x8xf32>, vector<8x8xf32>, vector<8x8xf32> -> vector<8x8xf32>
    %c0_16 = arith.constant 0 : index
    %c0_17 = arith.constant 0 : index
    %31 = vector.load %arg9[%c0_16, %c0_17] : memref<8x32xf32, #tpu.memory_space<vmem>>, vector<8x32xf32>
    %c0_18 = arith.constant 0 : index
    %c0_19 = arith.constant 0 : index
    %c0_20 = arith.constant 0 : index
    %32 = vector.load %arg5[%c0_18, %c0_19, %c0_20] : memref<1x8x32xf32, #tpu.memory_space<vmem>>, vector<1x8x32xf32>
    %33 = vector.shape_cast %32 : vector<1x8x32xf32> to vector<8x32xf32>
    %cst_21 = arith.constant dense<0.000000e+00> : vector<8x32xf32>
    %34 = tpu.matmul %30, %33, %cst_21 {dimension_numbers = #tpu.dot_dimension_numbers<[1], [0], [0], [1], [0, 0, 1, 1], [], []>} : vector<8x8xf32>, vector<8x32xf32>, vector<8x32xf32> -> vector<8x32xf32>
    %35 = arith.addf %31, %34 : vector<8x32xf32>
    %c0_22 = arith.constant 0 : index
    %c0_23 = arith.constant 0 : index
    %36 = vector.load %arg9[%c0_22, %c0_23] : memref<8x32xf32, #tpu.memory_space<vmem>>, vector<8x32xf32>
    tpu.vector_store %arg9[%c0_22, %c0_23], %35 {strides = array<i32>} : memref<8x32xf32, #tpu.memory_space<vmem>>, vector<8x32xf32>,
    %c3_i32 = arith.constant 3 : i32
    %37 = arith.cmpi eq, %arg1, %c3_i32 : i32
    %38 = arith.extui %37 : i1 to i32
    %c0_i32_24 = arith.constant 0 : i32
    %39 = arith.cmpi ne, %38, %c0_i32_24 : i32
    scf.if %39 {
      %c0_25 = arith.constant 0 : index
      %c0_26 = arith.constant 0 : index
      %40 = vector.load %arg9[%c0_25, %c0_26] : memref<8x32xf32, #tpu.memory_space<vmem>>, vector<8x32xf32>
      %c0_27 = arith.constant 0 : index
      %c0_28 = arith.constant 0 : index
      %41 = vector.load %arg6[%c0_27, %c0_28] : memref<1x32xf32, #tpu.memory_space<vmem>>, vector<1x32xf32>
      %42 = vector.broadcast %41 : vector<1x32xf32> to vector<8x32xf32>
      %43 = arith.addf %40, %42 : vector<8x32xf32>
      %c0_29 = arith.constant 0 : index
      %c0_30 = arith.constant 0 : index
      %c0_31 = arith.constant 0 : index
      %44 = vector.load %arg7[%c0_29, %c0_30, %c0_31] : memref<1x8x32xf32, #tpu.memory_space<vmem>>, vector<1x8x32xf32>
      %45 = vector.shape_cast %44 : vector<1x8x32xf32> to vector<8x32xf32>
      %46 = vector.shape_cast %43 : vector<8x32xf32> to vector<1x8x32xf32>
      tpu.vector_store %arg7[%c0_29, %c0_30, %c0_31], %46 {strides = array<i32>} : memref<1x8x32xf32, #tpu.memory_space<vmem>>, vector<1x8x32xf32>,
    } else {
    }
    return
  }
  func.func @transform_0(%arg0: i32, %arg1: i32) -> (i32, i32, i32) {
    %c0_i32 = arith.constant 0 : i32
    %c0_i32_0 = arith.constant 0 : i32
    %c0_i32_1 = arith.constant 0 : i32
    return %arg0, %c0_i32, %c0_i32_0 : i32, i32, i32
  }
  func.func @transform_1(%arg0: i32, %arg1: i32) -> (i32, i32, i32) {
    %c0_i32 = arith.constant 0 : i32
    %c0_i32_0 = arith.constant 0 : i32
    %c0_i32_1 = arith.constant 0 : i32
    return %arg1, %c0_i32, %c0_i32_0 : i32, i32, i32
  }
  func.func @transform_2(%arg0: i32, %arg1: i32) -> (i32, i32, i32) {
    %c0_i32 = arith.constant 0 : i32
    %c0_i32_0 = arith.constant 0 : i32
    %c0_i32_1 = arith.constant 0 : i32
    return %arg1, %c0_i32, %c0_i32_0 : i32, i32, i32
  }
  func.func @transform_3(%arg0: i32, %arg1: i32) -> (i32, i32, i32) {
    %c0_i32 = arith.constant 0 : i32
    %c0_i32_0 = arith.constant 0 : i32
    %c0_i32_1 = arith.constant 0 : i32
    return %arg1, %c0_i32, %c0_i32_0 : i32, i32, i32
  }
  func.func @transform_4(%arg0: i32, %arg1: i32) -> (i32, i32) {
    %c0_i32 = arith.constant 0 : i32
    %c0_i32_0 = arith.constant 0 : i32
    %c0_i32_1 = arith.constant 0 : i32
    return %c0_i32, %c0_i32_0 : i32, i32
  }
  func.func @transform_5(%arg0: i32, %arg1: i32) -> (i32, i32, i32) {
    %c0_i32 = arith.constant 0 : i32
    %c0_i32_0 = arith.constant 0 : i32
    %c0_i32_1 = arith.constant 0 : i32
    return %arg0, %c0_i32, %c0_i32_0 : i32, i32, i32
  }
}

</mosaic_0001>

<llo_original>
// kernel: tpu_custom_call.1
$region0: #{tpu_custom_call.1}
  #allocation0 [shape = 'u32[]', space=smem, size = 0x4, offset = 0x4, fixed_abs, tag = 'smem constant byte address 0x4 - core index']
  #allocation1 [shape = 'u32[144,128]{1,0:T(1,128)}', space=vmem, size = 0x12000, scoped, tag = 'internal scratch']
  #allocation2 [shape = 'f32[8,8]{1,0:T(8,128)}', space=vmem, size = 0x1000, scoped, tag = 'scratch operand']
  #allocation3 [shape = 'f32[8,32]{1,0:T(8,128)}', space=vmem, size = 0x1000, scoped, tag = 'scratch operand']
  %s0 = inlined_call_operand.vmem [shape: f32[2,8,32], index: 0, kind: input, shape index: {}]
  %s1 = inlined_call_operand.vmem [shape: f32[4,32,24], index: 1, kind: input, shape index: {}]
  %s2 = inlined_call_operand.vmem [shape: f32[4,1,24], index: 2, kind: input, shape index: {}]
  %s3 = inlined_call_operand.vmem [shape: f32[4,8,32], index: 3, kind: input, shape index: {}]
  %s4 = inlined_call_operand.vmem [shape: f32[1,32], index: 4, kind: input, shape index: {}]
  %s5 = inlined_call_operand.hbm [shape: f32[2,8,32], index: 5, kind: output, shape index: {}]
  %s6 = sld [smem:[#allocation0]]
  $region61: #{tpu_custom_call.1} parent=0
    _
  %s8 = ssub.s32 1, %s6
  %s9 = scalar_select 0, %s8, %s6
  $region1: #{tpu_custom_call.1} parent=0
    #allocation4 [shape = 'u8[8192]{0}', space=vmem, size = 0x2000, scoped, tag = 'output window, operand 0']
    #allocation5 [shape = 's32[2]{0}', space=sflag, size = 0x8, scoped, tag = 'scoped memory for tpu_custom_call.1']
    %10 = vsyncpa [#allocation5], 0
    %s11 = scalar_lea.sflag [#allocation5], 1
    %12 = vsyncpa %s11, 0
    loop: start=0, step=1, limit=10
    $region2: #{tpu_custom_call.1} parent=1 // loop_pre_header
      _
    $region3: #{tpu_custom_call.1} parent=1 // loop_header
      %s14 = sphi 0, %s18
      %p15 = scmp.ge.s32.totalorder %s14, 10
      %s21 = sphi 0, %s33
      %s22 = sphi 0, %s29
      %s23 = sphi 0, %s21
      %s24 = sphi 0, %s22
      %s25 = sphi 0, %s23
      %s26 = sphi 0, %s24
      %s36 = sphi 0, %s38
      %s39 = sphi 0, %s36
      %s40 = sphi 0, %s39
      %s56 = sphi 0, %s40
      %s62 = sphi 0, %s64
      %s65 = sphi 0, %s62
      %s66 = sphi 0, %s65
      %s82 = sphi 0, %s66
      %s88 = sphi 0, %s90
      %s91 = sphi 0, %s88
      %s92 = sphi 0, %s91
      %s108 = sphi 0, %s92
      %s114 = sphi 0, %s116
      %s117 = sphi 0, %s114
      %s118 = sphi 0, %s117
      %s134 = sphi 0, %s118
      %s138 = sphi 0, %s138
      %s140 = sphi 0, %s138
      %s141 = sphi 0, %s140
      %s155 = sphi 0, %s141
      %s161 = sphi 0, %s163
      %s164 = sphi 0, %s161
      %s165 = sphi 0, %s164
      %s181 = sphi 0, %s165
    $region4: #{tpu_custom_call.1} parent=1 // loop_header_branch
      %17 = sbr.rel (%p15) target = $region8
    $region5: #{tpu_custom_call.1} parent=1 // loop_body
      %s19 = ssub.s32 %s14, 1
      %s20 = ssub.s32 %s14, 2
      %s27 = sadd.s32 1, %s22
      %p28 = scmp.ge.s32.totalorder %s27, 4
      %s29 = scalar_select %p28, 0, %s27
      %s30 = sadd.s32 1, %s21
      %s31 = scalar_select %p28, %s30, %s21
      %p32 = scmp.ge.s32.totalorder %s31, 2
      %s33 = scalar_select %p32, 0, %s31
      %s34 = ssub.s32 %s21, %s33
      %p35 = scmp.eq.s32.totalorder %s34, 0
      %s37 = sadd.s32 %s36, 1
      %s38 = scalar_select %p35, %s36, %s37
      %p41 = pneg %p35
      %p42 = scmp.eq.s32.totalorder %s14, 7
      %p43 = por %p41, %p42
      %p44 = scmp.ne.s32.totalorder %s36, %s39
      %p45 = scmp.eq.s32.totalorder %s14, 0
      %p46 = por %p44, %p45
      %p47 = scmp.ne.s32.totalorder %s36, %s39
      %p48 = scmp.eq.s32.totalorder %s19, 7
      %p49 = por %p47, %p48
      %p50 = scmp.ne.s32.totalorder %s39, %s40
      %p51 = scmp.eq.s32.totalorder %s19, 0
      %p52 = por %p50, %p51
      %p53 = scmp.ne.s32.totalorder %s39, %s40
      %p54 = scmp.eq.s32.totalorder %s20, 7
      %p55 = por %p53, %p54
      %p57 = scmp.ne.s32.totalorder %s40, %s56
      %p58 = scmp.eq.s32.totalorder %s20, 0
      %p59 = por %p57, %p58
      %s60 = ssub.s32 %s22, %s29
      %p61 = scmp.eq.s32.totalorder %s60, 0
      %s63 = sadd.s32 %s62, 1
      %s64 = scalar_select %p61, %s62, %s63
      %p67 = pneg %p61
      %p68 = scmp.eq.s32.totalorder %s14, 7
      %p69 = por %p67, %p68
      %p70 = scmp.ne.s32.totalorder %s62, %s65
      %p71 = scmp.eq.s32.totalorder %s14, 0
      %p72 = por %p70, %p71
      %p73 = scmp.ne.s32.totalorder %s62, %s65
      %p74 = scmp.eq.s32.totalorder %s19, 7
      %p75 = por %p73, %p74
      %p76 = scmp.ne.s32.totalorder %s65, %s66
      %p77 = scmp.eq.s32.totalorder %s19, 0
      %p78 = por %p76, %p77
      %p79 = scmp.ne.s32.totalorder %s65, %s66
      %p80 = scmp.eq.s32.totalorder %s20, 7
      %p81 = por %p79, %p80
      %p83 = scmp.ne.s32.totalorder %s66, %s82
      %p84 = scmp.eq.s32.totalorder %s20, 0
      %p85 = por %p83, %p84
      %s86 = ssub.s32 %s22, %s29
      %p87 = scmp.eq.s32.totalorder %s86, 0
      %s89 = sadd.s32 %s88, 1
      %s90 = scalar_select %p87, %s88, %s89
      %p93 = pneg %p87
      %p94 = scmp.eq.s32.totalorder %s14, 7
      %p95 = por %p93, %p94
      %p96 = scmp.ne.s32.totalorder %s88, %s91
      %p97 = scmp.eq.s32.totalorder %s14, 0
      %p98 = por %p96, %p97
      %p99 = scmp.ne.s32.totalorder %s88, %s91
      %p100 = scmp.eq.s32.totalorder %s19, 7
      %p101 = por %p99, %p100
      %p102 = scmp.ne.s32.totalorder %s91, %s92
      %p103 = scmp.eq.s32.totalorder %s19, 0
      %p104 = por %p102, %p103
      %p105 = scmp.ne.s32.totalorder %s91, %s92
      %p106 = scmp.eq.s32.totalorder %s20, 7
      %p107 = por %p105, %p106
      %p109 = scmp.ne.s32.totalorder %s92, %s108
      %p110 = scmp.eq.s32.totalorder %s20, 0
      %p111 = por %p109, %p110
      %s112 = ssub.s32 %s22, %s29
      %p113 = scmp.eq.s32.totalorder %s112, 0
      %s115 = sadd.s32 %s114, 1
      %s116 = scalar_select %p113, %s114, %s115
      %p119 = pneg %p113
      %p120 = scmp.eq.s32.totalorder %s14, 7
      %p121 = por %p119, %p120
      %p122 = scmp.ne.s32.totalorder %s114, %s117
      %p123 = scmp.eq.s32.totalorder %s14, 0
      %p124 = por %p122, %p123
      %p125 = scmp.ne.s32.totalorder %s114, %s117
      %p126 = scmp.eq.s32.totalorder %s19, 7
      %p127 = por %p125, %p126
      %p128 = scmp.ne.s32.totalorder %s117, %s118
      %p129 = scmp.eq.s32.totalorder %s19, 0
      %p130 = por %p128, %p129
      %p131 = scmp.ne.s32.totalorder %s117, %s118
      %p132 = scmp.eq.s32.totalorder %s20, 7
      %p133 = por %p131, %p132
      %p135 = scmp.ne.s32.totalorder %s118, %s134
      %p136 = scmp.eq.s32.totalorder %s20, 0
      %p137 = por %p135, %p136
      %s139 = sadd.s32 %s138, 1
      %p142 = scmp.eq.s32.totalorder %s14, 7
      %p143 = scmp.ne.s32.totalorder %s138, %s140
      %p144 = scmp.eq.s32.totalorder %s14, 0
      %p145 = por %p143, %p144
      %p146 = scmp.ne.s32.totalorder %s138, %s140
      %p147 = scmp.eq.s32.totalorder %s19, 7
      %p148 = por %p146, %p147
      %p149 = scmp.ne.s32.totalorder %s140, %s141
      %p150 = scmp.eq.s32.totalorder %s19, 0
      %p151 = por %p149, %p150
      %p152 = scmp.ne.s32.totalorder %s140, %s141
      %p153 = scmp.eq.s32.totalorder %s20, 7
      %p154 = por %p152, %p153
      %p156 = scmp.ne.s32.totalorder %s141, %s155
      %p157 = scmp.eq.s32.totalorder %s20, 0
      %p158 = por %p156, %p157
      %s159 = ssub.s32 %s21, %s33
      %p160 = scmp.eq.s32.totalorder %s159, 0
      %s162 = sadd.s32 %s161, 1
      %s163 = scalar_select %p160, %s161, %s162
      %p166 = pneg %p160
      %p167 = scmp.eq.s32.totalorder %s14, 7
      %p168 = por %p166, %p167
      %p169 = scmp.ne.s32.totalorder %s161, %s164
      %p170 = scmp.eq.s32.totalorder %s14, 0
      %p171 = por %p169, %p170
      %p172 = scmp.ne.s32.totalorder %s161, %s164
      %p173 = scmp.eq.s32.totalorder %s19, 7
      %p174 = por %p172, %p173
      %p175 = scmp.ne.s32.totalorder %s164, %s165
      %p176 = scmp.eq.s32.totalorder %s19, 0
      %p177 = por %p175, %p176
      %p178 = scmp.ne.s32.totalorder %s164, %s165
      %p179 = scmp.eq.s32.totalorder %s20, 7
      %p180 = por %p178, %p179
      %p182 = scmp.ne.s32.totalorder %s165, %s181
      %p183 = scmp.eq.s32.totalorder %s20, 0
      %p184 = por %p182, %p183
      %p185 = scmp.le.s32.totalorder 1, %s14
      %p186 = scmp.lt.s32.totalorder %s14, 9
      %p187 = pnand %p185, %p186
      %p188 = pneg %p187
      // Predicated region
      $region9: #{tpu_custom_call.1} parent=5 // pred_check
        _
      $region10: #{tpu_custom_call.1} parent=5 // pred_check_branch
        %190 = sbr.rel (%p187) target = $region12
      $region11: #{tpu_custom_call.1} parent=5 // pred_region
        %s191 = ssub.s32 %s14, 1
        // Predicated region
        $region13: #{tpu_custom_call.1} parent=11 // pred_check
          %p192 = pneg %p151
        $region14: #{tpu_custom_call.1} parent=11 // pred_check_branch
          %194 = sbr.rel (%p192) target = $region16
        $region15: #{tpu_custom_call.1} parent=11 // pred_region
          _
        $region16: #{tpu_custom_call.1} parent=11 // pred_fallthru
          _
      $region12: #{tpu_custom_call.1} parent=5 // pred_fallthru
        _
      %p195 = scmp.lt.s32.totalorder %s14, 8
      // Predicated region
      $region17: #{tpu_custom_call.1} parent=5 // pred_check
        %p196 = pneg %p195
      $region18: #{tpu_custom_call.1} parent=5 // pred_check_branch
        %198 = sbr.rel (%p196) target = $region20
      $region19: #{tpu_custom_call.1} parent=5 // pred_region
        // Predicated region
        $region21: #{tpu_custom_call.1} parent=19 // pred_check
          %p199 = pneg %p46
        $region22: #{tpu_custom_call.1} parent=19 // pred_check_branch
          %201 = sbr.rel (%p199) target = $region24
        $region23: #{tpu_custom_call.1} parent=19 // pred_region
          %p202 = scmp.lt.s32.totalorder %s21, 1
          %s203 = scalar_select %p202, %s21, 1
          %s204 = smul.addr %s203, 8
          %s205 = scalar_lea.vmem %s0, %s204
        $region24: #{tpu_custom_call.1} parent=19 // pred_fallthru
          _
        // Predicated region
        $region25: #{tpu_custom_call.1} parent=19 // pred_check
          %p206 = pneg %p72
        $region26: #{tpu_custom_call.1} parent=19 // pred_check_branch
          %208 = sbr.rel (%p206) target = $region28
        $region27: #{tpu_custom_call.1} parent=19 // pred_region
          %p209 = scmp.lt.s32.totalorder %s22, 3
          %s210 = scalar_select %p209, %s22, 3
          %s211 = smul.addr %s210, 4
          %s212 = smul.addr %s211, 8
          %s213 = scalar_lea.vmem %s1, %s212
        $region28: #{tpu_custom_call.1} parent=19 // pred_fallthru
          _
        // Predicated region
        $region29: #{tpu_custom_call.1} parent=19 // pred_check
          %p214 = pneg %p98
        $region30: #{tpu_custom_call.1} parent=19 // pred_check_branch
          %216 = sbr.rel (%p214) target = $region32
        $region31: #{tpu_custom_call.1} parent=19 // pred_region
          %p217 = scmp.lt.s32.totalorder %s22, 3
          %s218 = scalar_select %p217, %s22, 3
          %s219 = scalar_lea.vmem %s2, %s218
        $region32: #{tpu_custom_call.1} parent=19 // pred_fallthru
          _
        // Predicated region
        $region33: #{tpu_custom_call.1} parent=19 // pred_check
          %p220 = pneg %p124
        $region34: #{tpu_custom_call.1} parent=19 // pred_check_branch
          %222 = sbr.rel (%p220) target = $region36
        $region35: #{tpu_custom_call.1} parent=19 // pred_region
          %p223 = scmp.lt.s32.totalorder %s22, 3
          %s224 = scalar_select %p223, %s22, 3
          %s225 = smul.addr %s224, 8
          %s226 = scalar_lea.vmem %s3, %s225
        $region36: #{tpu_custom_call.1} parent=19 // pred_fallthru
          _
      $region20: #{tpu_custom_call.1} parent=5 // pred_fallthru
        _
      %p227 = scmp.le.s32.totalorder 1, %s14
      %p228 = scmp.lt.s32.totalorder %s14, 9
      %p229 = pnand %p227, %p228
      %p230 = pneg %p229
      // Predicated region
      $region37: #{tpu_custom_call.1} parent=5 // pred_check
        _
      $region38: #{tpu_custom_call.1} parent=5 // pred_check_branch
        %232 = sbr.rel (%p229) target = $region40
      $region39: #{tpu_custom_call.1} parent=5 // pred_region
        %s233 = ssub.s32 %s14, 1
        %p234 = scmp.lt.s32.totalorder %s23, 1
        %s235 = scalar_select %p234, %s23, 1
        %s236 = smul.addr %s235, 8
        %s237 = scalar_lea.vmem %s0, %s236
        %p238 = pneg %p52
        %p239 = pneg %p49
        %p240 = scmp.lt.s32.totalorder %s24, 3
        %s241 = scalar_select %p240, %s24, 3
        %s242 = smul.addr %s241, 4
        %s243 = smul.addr %s242, 8
        %s244 = scalar_lea.vmem %s1, %s243
        %p245 = pneg %p78
        %p246 = pneg %p75
        %p247 = scmp.lt.s32.totalorder %s24, 3
        %s248 = scalar_select %p247, %s24, 3
        %s249 = scalar_lea.vmem %s2, %s248
        %p250 = pneg %p104
        %p251 = pneg %p101
        %p252 = scmp.lt.s32.totalorder %s24, 3
        %s253 = scalar_select %p252, %s24, 3
        %s254 = smul.addr %s253, 8
        %s255 = scalar_lea.vmem %s3, %s254
        %p256 = pneg %p130
        %p257 = pneg %p127
        %p258 = pneg %p151
        %p259 = pneg %p148
        %p260 = pneg %p177
        %p261 = pneg %p174
        %s262 = sand.u32 %s164, 1
        %s263 = scalar_lea.sflag [#allocation5], %s262
        %s264 = sand.u32 %s164, 1
        %s265 = smul.addr %s264, 8
        %s266 = scalar_lea.vmem [#allocation4], %s265
        %p267 = scmp.lt.s32.totalorder %s23, 1
        %s268 = scalar_select %p267, %s23, 1
        %s269 = smul.addr %s268, 8
        %s270 = scalar_lea.vmem %s0, %s269
        %p271 = scmp.lt.s32.totalorder %s24, 3
        %s272 = scalar_select %p271, %s24, 3
        %s273 = smul.addr %s272, 4
        %s274 = smul.addr %s273, 8
        %s275 = scalar_lea.vmem %s1, %s274
        %p276 = scmp.lt.s32.totalorder %s24, 3
        %s277 = scalar_select %p276, %s24, 3
        %s278 = scalar_lea.vmem %s2, %s277
        %p279 = scmp.lt.s32.totalorder %s24, 3
        %s280 = scalar_select %p279, %s24, 3
        %s281 = smul.addr %s280, 8
        %s282 = scalar_lea.vmem %s3, %s281
        %p283 = scmp.eq.s32.totalorder %s24, 0
        // Predicated region
        $region41: #{tpu_custom_call.1} parent=39 // pred_check
          %p284 = pneg %p283
        $region42: #{tpu_custom_call.1} parent=39 // pred_check_branch
          %286 = sbr.rel (%p284) target = $region44
        $region43: #{tpu_custom_call.1} parent=39 // pred_region
          %v287 = vlaneseq
          %v288 = vshrl.u32 %v287, 7
          %v289 = vlaneseq
          %v290 = vand.u32 %v289, 127
          %vm291 = vcmp.le.s32.totalorder %v290, %v288
          %v292 = vsel %vm291, 0.0, -inf
          %vm293 = vcmask 64512
          %294 = vst.msk [vmem:[#allocation2] sm:$0xff] %vm293, %v292
          %vm295 = vcmask 261120
          %296 = vst.msk [vmem:[#allocation3] sm:$0xff] %vm295, 0.0
        $region44: #{tpu_custom_call.1} parent=39 // pred_fallthru
          _
        %v297 = vld [vmem:[%s270] sm:$0xff]
        %v298 = vld [vmem:[%s275] sm:$0xff]
        %v299 = vld [vmem:[%s275 + $0x8] sm:$0xff]
        %v300 = vld [vmem:[%s275 + $0x10] sm:$0xff]
        %v301 = vld [vmem:[%s275 + $0x18] sm:$0xff]
        %v302 = vld [vmem:[%s278] sm:$0x1]
        %v304 = vlaneseq
        %v305 = vshrl.u32 %v304, 7
        %v306 = vsub.s32 0, %v305
        %v307 = vrot.slane %v302, %v306
        %vm309 = vcmask 261120
        %v311 = vsel %vm309, %v297, 0
        %313 = vmatprep.subr.mxu0 0.0
        %314 = vmatpush1.msra.mxu0 %v298
        %315 = vmatprep.subr.mxu0 0.0
        %316 = vmatpush1.msra.mxu0 %v299
        %317 = vmatprep.subr.mxu0 0.0
        %318 = vmatpush1.msra.mxu0 %v300
        %319 = vmatprep.subr.mxu0 0.0
        %320 = vmatpush1.msra.mxu0 %v301
        %321 = vmatprep.subr.mxu0 0.0
        %322 = vmatpush1.msra.mxu0 0.0
        %323 = vmatprep.subr.mxu0 0.0
        %324 = vmatpush1.msra.mxu0 0.0
        %325 = vmatprep.subr.mxu0 0.0
        %326 = vmatpush1.msra.mxu0 0.0
        %327 = vmatprep.subr.mxu0 0.0
        %328 = vmatpush1.msra.mxu0 0.0
        %329 = vmatprep.subr.mxu0 0.0
        %330 = vmatpush1.msra.mxu0 0.0
        %331 = vmatprep.subr.mxu0 0.0
        %332 = vmatpush1.msra.mxu0 0.0
        %333 = vmatprep.subr.mxu0 0.0
        %334 = vmatpush1.msra.mxu0 0.0
        %335 = vmatprep.subr.mxu0 0.0
        %336 = vmatpush1.msra.mxu0 0.0
        %337 = vmatprep.subr.mxu0 0.0
        %338 = vmatpush1.msra.mxu0 0.0
        %339 = vmatprep.subr.mxu0 0.0
        %340 = vmatpush1.msra.mxu0 0.0
        %341 = vmatprep.subr.mxu0 0.0
        %342 = vmatpush1.msra.mxu0 0.0
        %343 = vmatprep.subr.mxu0 0.0
        %344 = vmatpush1.msra.mxu0 0.0
        %345 = vmatprep.subr.mxu0 0.0
        %346 = vmatpush1.msra.mxu0 0.0
        %347 = vmatprep.subr.mxu0 0.0
        %348 = vmatpush1.msra.mxu0 0.0
        %349 = vmatprep.subr.mxu0 0.0
        %350 = vmatpush1.msra.mxu0 0.0
        %351 = vmatprep.subr.mxu0 0.0
        %352 = vmatpush1.msra.mxu0 0.0
        %353 = vmatprep.subr.mxu0 0.0
        %354 = vmatpush1.msra.mxu0 0.0
        %355 = vmatprep.subr.mxu0 0.0
        %356 = vmatpush1.msra.mxu0 0.0
        %357 = vmatprep.subr.mxu0 0.0
        %358 = vmatpush1.msra.mxu0 0.0
        %359 = vmatprep.subr.mxu0 0.0
        %360 = vmatpush1.msra.mxu0 0.0
        %361 = vmatprep.subr.mxu0 0.0
        %362 = vmatpush1.msra.mxu0 0.0
        %363 = vmatprep.subr.mxu0 0.0
        %364 = vmatpush1.msra.mxu0 0.0
        %365 = vmatprep.subr.mxu0 0.0
        %366 = vmatpush1.msra.mxu0 0.0
        %367 = vmatprep.subr.mxu0 0.0
        %368 = vmatpush1.msra.mxu0 0.0
        %369 = vmatprep.subr.mxu0 0.0
        %370 = vmatpush1.msra.mxu0 0.0
        %371 = vmatprep.subr.mxu0 0.0
        %372 = vmatpush1.msra.mxu0 0.0
        %373 = vmatprep.subr.mxu0 0.0
        %374 = vmatpush1.msra.mxu0 0.0
        %375 = vmatprep.subr.mxu0 0.0
        %376 = vmatpush1.msra.mxu0 0.0
        %377 = vmatprep.mubr.f32.mxu0 0.0
        %378 = vmatmul.mubr.f32.gmra.mrb[0].mxu0 %v311
        %v379 = vpop.f32.mrb[0].mxu0
        %v380 = vadd.f32 %v307, %v379
        %v381 = vpop.f32.mrb[0].mxu0
        %382 = vdwg.mxu0
        %v383 = vmul.f32 %v380, 0.35355338
        %v384 = vld [vmem:[#allocation2] sm:$0xff]
        %386 = vrot.lane.b32.xlu0 %v380, 120
        %v387 = vpop.permute.xlu0 %386
        %vm388 = vcmask 64512
        %v390 = vsel %vm388, %v383, 0
        %v392 = vsel %vm388, %v387, 0
        %394 = vmatprep.subr.mxu0 0.0
        %395 = vmatpush1.xpose.msra.mxu0 %v392
        %396 = vmatprep.subr.mxu0 0.0
        %397 = vmatpush1.xpose.msra.mxu0 0.0
        %398 = vmatprep.subr.mxu0 0.0
        %399 = vmatpush1.xpose.msra.mxu0 0.0
        %400 = vmatprep.subr.mxu0 0.0
        %401 = vmatpush1.xpose.msra.mxu0 0.0
        %402 = vmatprep.subr.mxu0 0.0
        %403 = vmatpush1.xpose.msra.mxu0 0.0
        %404 = vmatprep.subr.mxu0 0.0
        %405 = vmatpush1.xpose.msra.mxu0 0.0
        %406 = vmatprep.subr.mxu0 0.0
        %407 = vmatpush1.xpose.msra.mxu0 0.0
        %408 = vmatprep.subr.mxu0 0.0
        %409 = vmatpush1.xpose.msra.mxu0 0.0
        %410 = vmatprep.subr.mxu0 0.0
        %411 = vmatpush1.xpose.msra.mxu0 0.0
        %412 = vmatprep.subr.mxu0 0.0
        %413 = vmatpush1.xpose.msra.mxu0 0.0
        %414 = vmatprep.subr.mxu0 0.0
        %415 = vmatpush1.xpose.msra.mxu0 0.0
        %416 = vmatprep.subr.mxu0 0.0
        %417 = vmatpush1.xpose.msra.mxu0 0.0
        %418 = vmatprep.subr.mxu0 0.0
        %419 = vmatpush1.xpose.msra.mxu0 0.0
        %420 = vmatprep.subr.mxu0 0.0
        %421 = vmatpush1.xpose.msra.mxu0 0.0
        %422 = vmatprep.subr.mxu0 0.0
        %423 = vmatpush1.xpose.msra.mxu0 0.0
        %424 = vmatprep.subr.mxu0 0.0
        %425 = vmatpush1.xpose.msra.mxu0 0.0
        %426 = vmatprep.subr.mxu0 0.0
        %427 = vmatpush1.xpose.msra.mxu0 0.0
        %428 = vmatprep.subr.mxu0 0.0
        %429 = vmatpush1.xpose.msra.mxu0 0.0
        %430 = vmatprep.subr.mxu0 0.0
        %431 = vmatpush1.xpose.msra.mxu0 0.0
        %432 = vmatprep.subr.mxu0 0.0
        %433 = vmatpush1.xpose.msra.mxu0 0.0
        %434 = vmatprep.subr.mxu0 0.0
        %435 = vmatpush1.xpose.msra.mxu0 0.0
        %436 = vmatprep.subr.mxu0 0.0
        %437 = vmatpush1.xpose.msra.mxu0 0.0
        %438 = vmatprep.subr.mxu0 0.0
        %439 = vmatpush1.xpose.msra.mxu0 0.0
        %440 = vmatprep.subr.mxu0 0.0
        %441 = vmatpush1.xpose.msra.mxu0 0.0
        %442 = vmatprep.subr.mxu0 0.0
        %443 = vmatpush1.xpose.msra.mxu0 0.0
        %444 = vmatprep.subr.mxu0 0.0
        %445 = vmatpush1.xpose.msra.mxu0 0.0
        %446 = vmatprep.subr.mxu0 0.0
        %447 = vmatpush1.xpose.msra.mxu0 0.0
        %448 = vmatprep.subr.mxu0 0.0
        %449 = vmatpush1.xpose.msra.mxu0 0.0
        %450 = vmatprep.subr.mxu0 0.0
        %451 = vmatpush1.xpose.msra.mxu0 0.0
        %452 = vmatprep.subr.mxu0 0.0
        %453 = vmatpush1.xpose.msra.mxu0 0.0
        %454 = vmatprep.subr.mxu0 0.0
        %455 = vmatpush1.xpose.msra.mxu0 0.0
        %456 = vmatprep.subr.mxu0 0.0
        %457 = vmatpush1.xpose.msra.mxu0 0.0
        %458 = vmatprep.mubr.f32.mxu0 0.0
        %459 = vmatmul.mubr.f32.gmra.mrb[0].mxu0 %v390
        %v460 = vpop.f32.mrb[0].mxu0
        %v461 = vadd.f32 %v384, %v460
        %v462 = vpop.f32.mrb[0].mxu0
        %463 = vdwg.mxu0
        %v464 = vsel %vm388, %v461, -inf
        %465 = vmax.xlane.f32.xlu0 %v464
        %v466 = vpop.xlane.xlu0 %465
        %v467 = vsub.f32 %v461, %v466
        %v468 = vmul.f32 %v467, 1.442695
        %v469 = vpow.pop %v468
        %v470 = vsel %vm388, %v469, 0.0
        %471 = vadd.xlane.f32.xlu0 %v470
        %v472 = vpop.xlane.xlu0 %471
        %v473 = vrcp.pop %v472
        %v474 = vmul.f32 %v469, %v473
        %475 = vrot.lane.b32.xlu0 %v380, 112
        %v476 = vpop.permute.xlu0 %475
        %v479 = vsel %vm388, %v474, 0
        %481 = vmatprep.subr.mxu0 0.0
        %482 = vmatpush1.msra.mxu0 %v476
        %483 = vmatprep.subr.mxu0 0.0
        %484 = vmatpush1.msra.mxu0 0.0
        %485 = vmatprep.subr.mxu0 0.0
        %486 = vmatpush1.msra.mxu0 0.0
        %487 = vmatprep.subr.mxu0 0.0
        %488 = vmatpush1.msra.mxu0 0.0
        %489 = vmatprep.subr.mxu0 0.0
        %490 = vmatpush1.msra.mxu0 0.0
        %491 = vmatprep.subr.mxu0 0.0
        %492 = vmatpush1.msra.mxu0 0.0
        %493 = vmatprep.subr.mxu0 0.0
        %494 = vmatpush1.msra.mxu0 0.0
        %495 = vmatprep.subr.mxu0 0.0
        %496 = vmatpush1.msra.mxu0 0.0
        %497 = vmatprep.subr.mxu0 0.0
        %498 = vmatpush1.msra.mxu0 0.0
        %499 = vmatprep.subr.mxu0 0.0
        %500 = vmatpush1.msra.mxu0 0.0
        %501 = vmatprep.subr.mxu0 0.0
        %502 = vmatpush1.msra.mxu0 0.0
        %503 = vmatprep.subr.mxu0 0.0
        %504 = vmatpush1.msra.mxu0 0.0
        %505 = vmatprep.subr.mxu0 0.0
        %506 = vmatpush1.msra.mxu0 0.0
        %507 = vmatprep.subr.mxu0 0.0
        %508 = vmatpush1.msra.mxu0 0.0
        %509 = vmatprep.subr.mxu0 0.0
        %510 = vmatpush1.msra.mxu0 0.0
        %511 = vmatprep.subr.mxu0 0.0
        %512 = vmatpush1.msra.mxu0 0.0
        %513 = vmatprep.subr.mxu0 0.0
        %514 = vmatpush1.msra.mxu0 0.0
        %515 = vmatprep.subr.mxu0 0.0
        %516 = vmatpush1.msra.mxu0 0.0
        %517 = vmatprep.subr.mxu0 0.0
        %518 = vmatpush1.msra.mxu0 0.0
        %519 = vmatprep.subr.mxu0 0.0
        %520 = vmatpush1.msra.mxu0 0.0
        %521 = vmatprep.subr.mxu0 0.0
        %522 = vmatpush1.msra.mxu0 0.0
        %523 = vmatprep.subr.mxu0 0.0
        %524 = vmatpush1.msra.mxu0 0.0
        %525 = vmatprep.subr.mxu0 0.0
        %526 = vmatpush1.msra.mxu0 0.0
        %527 = vmatprep.subr.mxu0 0.0
        %528 = vmatpush1.msra.mxu0 0.0
        %529 = vmatprep.subr.mxu0 0.0
        %530 = vmatpush1.msra.mxu0 0.0
        %531 = vmatprep.subr.mxu0 0.0
        %532 = vmatpush1.msra.mxu0 0.0
        %533 = vmatprep.subr.mxu0 0.0
        %534 = vmatpush1.msra.mxu0 0.0
        %535 = vmatprep.subr.mxu0 0.0
        %536 = vmatpush1.msra.mxu0 0.0
        %537 = vmatprep.subr.mxu0 0.0
        %538 = vmatpush1.msra.mxu0 0.0
        %539 = vmatprep.subr.mxu0 0.0
        %540 = vmatpush1.msra.mxu0 0.0
        %541 = vmatprep.subr.mxu0 0.0
        %542 = vmatpush1.msra.mxu0 0.0
        %543 = vmatprep.subr.mxu0 0.0
        %544 = vmatpush1.msra.mxu0 0.0
        %545 = vmatprep.mubr.f32.mxu0 0.0
        %546 = vmatmul.mubr.f32.gmra.mrb[0].mxu0 %v479
        %v547 = vpop.f32.mrb[0].mxu0
        %v548 = vadd.f32 0.0, %v547
        %v549 = vpop.f32.mrb[0].mxu0
        %550 = vdwg.mxu0
        %v551 = vld [vmem:[#allocation3] sm:$0xff]
        %v552 = vld [vmem:[%s282] sm:$0xff]
        %v554 = vsel %vm388, %v548, 0
        %556 = vmatprep.subr.mxu0 0.0
        %557 = vmatpush1.msra.mxu0 %v552
        %558 = vmatprep.subr.mxu0 0.0
        %559 = vmatpush1.msra.mxu0 0.0
        %560 = vmatprep.subr.mxu0 0.0
        %561 = vmatpush1.msra.mxu0 0.0
        %562 = vmatprep.subr.mxu0 0.0
        %563 = vmatpush1.msra.mxu0 0.0
        %564 = vmatprep.subr.mxu0 0.0
        %565 = vmatpush1.msra.mxu0 0.0
        %566 = vmatprep.subr.mxu0 0.0
        %567 = vmatpush1.msra.mxu0 0.0
        %568 = vmatprep.subr.mxu0 0.0
        %569 = vmatpush1.msra.mxu0 0.0
        %570 = vmatprep.subr.mxu0 0.0
        %571 = vmatpush1.msra.mxu0 0.0
        %572 = vmatprep.subr.mxu0 0.0
        %573 = vmatpush1.msra.mxu0 0.0
        %574 = vmatprep.subr.mxu0 0.0
        %575 = vmatpush1.msra.mxu0 0.0
        %576 = vmatprep.subr.mxu0 0.0
        %577 = vmatpush1.msra.mxu0 0.0
        %578 = vmatprep.subr.mxu0 0.0
        %579 = vmatpush1.msra.mxu0 0.0
        %580 = vmatprep.subr.mxu0 0.0
        %581 = vmatpush1.msra.mxu0 0.0
        %582 = vmatprep.subr.mxu0 0.0
        %583 = vmatpush1.msra.mxu0 0.0
        %584 = vmatprep.subr.mxu0 0.0
        %585 = vmatpush1.msra.mxu0 0.0
        %586 = vmatprep.subr.mxu0 0.0
        %587 = vmatpush1.msra.mxu0 0.0
        %588 = vmatprep.subr.mxu0 0.0
        %589 = vmatpush1.msra.mxu0 0.0
        %590 = vmatprep.subr.mxu0 0.0
        %591 = vmatpush1.msra.mxu0 0.0
        %592 = vmatprep.subr.mxu0 0.0
        %593 = vmatpush1.msra.mxu0 0.0
        %594 = vmatprep.subr.mxu0 0.0
        %595 = vmatpush1.msra.mxu0 0.0
        %596 = vmatprep.subr.mxu0 0.0
        %597 = vmatpush1.msra.mxu0 0.0
        %598 = vmatprep.subr.mxu0 0.0
        %599 = vmatpush1.msra.mxu0 0.0
        %600 = vmatprep.subr.mxu0 0.0
        %601 = vmatpush1.msra.mxu0 0.0
        %602 = vmatprep.subr.mxu0 0.0
        %603 = vmatpush1.msra.mxu0 0.0
        %604 = vmatprep.subr.mxu0 0.0
        %605 = vmatpush1.msra.mxu0 0.0
        %606 = vmatprep.subr.mxu0 0.0
        %607 = vmatpush1.msra.mxu0 0.0
        %608 = vmatprep.subr.mxu0 0.0
        %609 = vmatpush1.msra.mxu0 0.0
        %610 = vmatprep.subr.mxu0 0.0
        %611 = vmatpush1.msra.mxu0 0.0
        %612 = vmatprep.subr.mxu0 0.0
        %613 = vmatpush1.msra.mxu0 0.0
        %614 = vmatprep.subr.mxu0 0.0
        %615 = vmatpush1.msra.mxu0 0.0
        %616 = vmatprep.subr.mxu0 0.0
        %617 = vmatpush1.msra.mxu0 0.0
        %618 = vmatprep.subr.mxu0 0.0
        %619 = vmatpush1.msra.mxu0 0.0
        %620 = vmatprep.mubr.f32.mxu0 0.0
        %621 = vmatmul.mubr.f32.gmra.mrb[0].mxu0 %v554
        %v622 = vpop.f32.mrb[0].mxu0
        %v623 = vadd.f32 0.0, %v622
        %v624 = vpop.f32.mrb[0].mxu0
        %625 = vdwg.mxu0
        %v626 = vadd.f32 %v551, %v623
        %627 = vst.msk [vmem:[#allocation3] sm:$0xff] %vm309, %v626
        %p628 = scmp.eq.s32.totalorder %s24, 3
        // Predicated region
        $region45: #{tpu_custom_call.1} parent=39 // pred_check
          %p629 = pneg %p628
        $region46: #{tpu_custom_call.1} parent=39 // pred_check_branch
          %631 = sbr.rel (%p629) target = $region48
        $region47: #{tpu_custom_call.1} parent=39 // pred_region
          %v632 = vld [vmem:[#allocation3] sm:$0xff]
          %v633 = vld [vmem:[%s4] sm:$0x1]
          %v635 = vlaneseq
          %v636 = vshrl.u32 %v635, 7
          %v637 = vsub.s32 0, %v636
          %v638 = vrot.slane %v633, %v637
          %v640 = vadd.f32 %v632, %v638
          %641 = vst.msk [vmem:[%s266] sm:$0xff] %vm309, %v640
        $region48: #{tpu_custom_call.1} parent=39 // pred_fallthru
          _
        %s642 = sand.u32 %s164, 1
        %s643 = scalar_lea.sflag [#allocation5], %s642
        %s644 = sand.u32 %s164, 1
        %s645 = smul.addr %s644, 8
        %s646 = scalar_lea.vmem [#allocation4], %s645
        // Predicated region
        $region49: #{tpu_custom_call.1} parent=39 // pred_check
          %p647 = pneg %p174
        $region50: #{tpu_custom_call.1} parent=39 // pred_check_branch
          %649 = sbr.rel (%p647) target = $region52
        $region51: #{tpu_custom_call.1} parent=39 // pred_region
          %s651 = ssub.s32 128, 128
          %652 = vsyncadd %s643, %s651
          %s653 = smul.addr %s23, 128
          %s654 = scalar_lea.hbm %s5, %s653
          %s656 = sshll.u32 %s646, 4
          %s657 = int_to_ptr.vmem [resolvable:$true] %s656
          %659 = dma.vmem_to_hbm [thread:$0]  %s657, 128, %s654, %s643
        $region52: #{tpu_custom_call.1} parent=39 // pred_fallthru
          _
      $region40: #{tpu_custom_call.1} parent=5 // pred_fallthru
        _
      %p660 = scmp.le.s32.totalorder 2, %s14
      // Predicated region
      $region53: #{tpu_custom_call.1} parent=5 // pred_check
        %p661 = pneg %p660
      $region54: #{tpu_custom_call.1} parent=5 // pred_check_branch
        %663 = sbr.rel (%p661) target = $region56
      $region55: #{tpu_custom_call.1} parent=5 // pred_region
        %s664 = ssub.s32 %s14, 2
        // Predicated region
        $region57: #{tpu_custom_call.1} parent=55 // pred_check
          %p665 = pneg %p180
        $region58: #{tpu_custom_call.1} parent=55 // pred_check_branch
          %667 = sbr.rel (%p665) target = $region60
        $region59: #{tpu_custom_call.1} parent=55 // pred_region
          %s668 = sand.u32 %s165, 1
          %s669 = scalar_lea.sflag [#allocation5], %s668
          %s670 = sand.u32 %s165, 1
          %s671 = smul.addr %s670, 8
          %s672 = scalar_lea.vmem [#allocation4], %s671
          %673 = dma.done %s669, 128
        $region60: #{tpu_custom_call.1} parent=55 // pred_fallthru
          _
      $region56: #{tpu_custom_call.1} parent=5 // pred_fallthru
        _
    $region6: #{tpu_custom_call.1} parent=1 // loop_footer
      %s18 = sadd.s32 1, %s14
    $region7: #{tpu_custom_call.1} parent=1 // loop_footer_branch
      %13 = sbr.rel target = $region3
    $region8: #{tpu_custom_call.1} parent=1 // loop_exit
      _
    %674 = vsyncpa [#allocation5], 1
    %s675 = scalar_lea.sflag [#allocation5], 1
    %676 = vsyncpa %s675, 1

</llo_original>
